<compile_context>
chip_gen: v5e
topology: v5e:2x2
jax: 0.10.0
libtpu: 0.0.40
codegen_flags: <defaults>
</compile_context>

<pallas_src>
import jax
import jax.numpy as jnp
from jax.experimental import pallas as pl
from jax.experimental.pallas import tpu as pltpu


def conv1x1_tanh_kernel(w_ref, b_ref, x_ref, o_ref):
    # w_ref: (Cout, Cin)  -- VMEM-resident across the whole grid
    # b_ref: (Cout, 1)    -- VMEM-resident
    # x_ref: (Cin, tm)    -- per-(batch, M-tile) activation block
    # o_ref: (Cout, tm)
    acc = jnp.dot(w_ref[...], x_ref[...], preferred_element_type=jnp.float32)
    acc = acc + b_ref[...]                      # broadcast bias over M (lanes)
    o_ref[...] = jnp.tanh(acc).astype(o_ref.dtype)


def _pick_tile_m(m_pad, n_batch, cap=2048):
    """Largest 128-multiple tile that divides m_pad, capped for VMEM.

    m_pad is already a multiple of 128.  Splitting M is NOT required for
    megacore when n_batch >= 2 (the batch grid axis is 'parallel'); only when
    the whole grid would collapse to a single block do we split M once so a
    v7x part can shard the work across its two TensorCores.
    """
    cap = min(cap, m_pad)
    tm = 128
    for t in range(cap - cap % 128, 127, -128):
        if m_pad % t == 0:
            tm = t
            break
    if n_batch * (m_pad // tm) < 2:
        half = tm // 2
        for t in range(half - half % 128, 127, -128):
            if t > 0 and m_pad % t == 0:
                tm = t
                break
    return tm


def conv1x1_tanh(x_nchw, weight, bias):
    """x_nchw: (N, Cin, H, W); weight: (Cout, Cin) (1x1 kernel squeezed); bias: (Cout,)."""
    N, Cin, H, W = x_nchw.shape
    Cout = weight.shape[0]
    M = H * W
    M_pad = ((M + 127) // 128) * 128            # keep stores lane-dense

    # Channel-major: contiguous NCHW reshape is free (no transpose pass).
    x_r = x_nchw.reshape(N, Cin, M)
    if M_pad != M:
        x_r = jnp.pad(x_r, ((0, 0), (0, 0), (0, M_pad - M)))
    b_col = bias.reshape(Cout, 1)

    tm = _pick_tile_m(M_pad, N)
    grid = (N, M_pad // tm)

    out = pl.pallas_call(
        conv1x1_tanh_kernel,
        out_shape=jax.ShapeDtypeStruct((N, Cout, M_pad), x_nchw.dtype),
        grid_spec=pltpu.PrefetchScalarGridSpec(
            num_scalar_prefetch=0,
            grid=grid,
            in_specs=[
                # Weight and bias: constant block index -> stay resident in VMEM.
                pl.BlockSpec((Cout, Cin), lambda n, j: (0, 0)),
                pl.BlockSpec((Cout, 1), lambda n, j: (0, 0)),
                # Activation tile for (batch n, M-tile j); batch dim squeezed.
                pl.BlockSpec((None, Cin, tm), lambda n, j: (n, 0, j)),
            ],
            out_specs=pl.BlockSpec((None, Cout, tm), lambda n, j: (n, 0, j)),
        ),
        compiler_params=pltpu.CompilerParams(
            dimension_semantics=("parallel", "parallel"),
        ),
    )(weight, b_col, x_r)

    if M_pad != M:
        out = out[:, :, :M]
    return out.reshape(N, Cout, H, W)


def reference(x_nchw, weight, bias):
    # Pure-JAX reference of Conv2d(128, 512, 1) + tanh
    y = jnp.einsum("nchw,oc->nohw", x_nchw, weight) + bias[None, :, None, None]
    return jnp.tanh(y)


if __name__ == "__main__":
    key = jax.random.PRNGKey(0)
    k_x, k_w, k_b = jax.random.split(key, 3)

    # Module fixes channels: Conv2d(128, 512, 1). Small spatial dims for test.
    N, Cin, H, W = 2, 128, 16, 16
    Cout = 512

    x = jax.random.normal(k_x, (N, Cin, H, W), dtype=jnp.float32)
    # Deterministic synthetic params (Kaiming-uniform-like bound, as in PyTorch)
    bound = 1.0 / (Cin ** 0.5)
    weight = jax.random.uniform(k_w, (Cout, Cin), minval=-bound, maxval=bound,
                                dtype=jnp.float32)
    bias = jax.random.uniform(k_b, (Cout,), minval=-bound, maxval=bound,
                              dtype=jnp.float32)

    # TODO(synk): the module's `print('v1.grad: ', v1.requires_grad)` is a
    # Python-side debug print with no numerical effect; not reproduced.
    out = conv1x1_tanh(x, weight, bias)
    out = jax.block_until_ready(out)

    ref = reference(x, weight, bias)
    assert out.shape == (N, Cout, H, W), out.shape
    assert jnp.allclose(out, ref, atol=1e-5, rtol=1e-5), "mismatch vs reference"

    print("KERNEL_OK")
</pallas_src>

<mosaic_0001>
module attributes {stable_mosaic.version = 11 : i64} {
  func.func @conv1x1_tanh_kernel(%arg0: i32, %arg1: i32, %arg2: memref<512x128xf32, #tpu.memory_space<vmem>>, %arg3: memref<512x1xf32, #tpu.memory_space<vmem>>, %arg4: memref<1x128x256xf32, #tpu.memory_space<vmem>>, %arg5: memref<1x512x256xf32, #tpu.memory_space<vmem>>) attributes {dimension_semantics = [#tpu.dimension_semantics<parallel>, #tpu.dimension_semantics<parallel>], iteration_bounds = array<i64: 2, 1>, scalar_prefetch = 0 : i64, scratch_operands = 0 : i64, tpu.core_type = #tpu.core_type<tc>, window_params = [{pipeline_mode = #tpu.pipeline_mode<synchronous>, transform_indices = @transform_0, window_bounds = array<i64: 512, 128>}, {pipeline_mode = #tpu.pipeline_mode<synchronous>, transform_indices = @transform_1, window_bounds = array<i64: 512, 1>}, {transform_indices = @transform_2, window_bounds = array<i64: 1, 128, 256>}, {transform_indices = @transform_3, window_bounds = array<i64: 1, 512, 256>}]} {
    %c0 = arith.constant 0 : index
    %c0_0 = arith.constant 0 : index
    %0 = vector.load %arg2[%c0, %c0_0] : memref<512x128xf32, #tpu.memory_space<vmem>>, vector<512x128xf32>
    %c0_1 = arith.constant 0 : index
    %c0_2 = arith.constant 0 : index
    %c0_3 = arith.constant 0 : index
    %1 = vector.load %arg4[%c0_1, %c0_2, %c0_3] : memref<1x128x256xf32, #tpu.memory_space<vmem>>, vector<1x128x256xf32>
    %2 = vector.shape_cast %1 : vector<1x128x256xf32> to vector<128x256xf32>
    %cst = arith.constant dense<0.000000e+00> : vector<512x256xf32>
    %3 = tpu.matmul %0, %2, %cst {dimension_numbers = #tpu.dot_dimension_numbers<[1], [0], [0], [1], [0, 0, 1, 1], [], []>} : vector<512x128xf32>, vector<128x256xf32>, vector<512x256xf32> -> vector<512x256xf32>
    %c0_4 = arith.constant 0 : index
    %c0_5 = arith.constant 0 : index
    %4 = vector.load %arg3[%c0_4, %c0_5] : memref<512x1xf32, #tpu.memory_space<vmem>>, vector<512x1xf32>
    %5 = vector.broadcast %4 : vector<512x1xf32> to vector<512x256xf32>
    %6 = arith.addf %3, %5 : vector<512x256xf32>
    %7 = math.tanh %6 : vector<512x256xf32>
    %c0_6 = arith.constant 0 : index
    %c0_7 = arith.constant 0 : index
    %c0_8 = arith.constant 0 : index
    %8 = vector.load %arg5[%c0_6, %c0_7, %c0_8] : memref<1x512x256xf32, #tpu.memory_space<vmem>>, vector<1x512x256xf32>
    %9 = vector.shape_cast %8 : vector<1x512x256xf32> to vector<512x256xf32>
    %10 = vector.shape_cast %7 : vector<512x256xf32> to vector<1x512x256xf32>
    tpu.vector_store %arg5[%c0_6, %c0_7, %c0_8], %10 {strides = array<i32>} : memref<1x512x256xf32, #tpu.memory_space<vmem>>, vector<1x512x256xf32>,
    return
  }
  func.func @transform_0(%arg0: i32, %arg1: i32) -> (i32, i32) {
    %c0_i32 = arith.constant 0 : i32
    %c0_i32_0 = arith.constant 0 : i32
    %c0_i32_1 = arith.constant 0 : i32
    return %c0_i32, %c0_i32_0 : i32, i32
  }
  func.func @transform_1(%arg0: i32, %arg1: i32) -> (i32, i32) {
    %c0_i32 = arith.constant 0 : i32
    %c0_i32_0 = arith.constant 0 : i32
    %c0_i32_1 = arith.constant 0 : i32
    return %c0_i32, %c0_i32_0 : i32, i32
  }
  func.func @transform_2(%arg0: i32, %arg1: i32) -> (i32, i32, i32) {
    %c0_i32 = arith.constant 0 : i32
    %c0_i32_0 = arith.constant 0 : i32
    return %arg0, %c0_i32, %arg1 : i32, i32, i32
  }
  func.func @transform_3(%arg0: i32, %arg1: i32) -> (i32, i32, i32) {
    %c0_i32 = arith.constant 0 : i32
    %c0_i32_0 = arith.constant 0 : i32
    return %arg0, %c0_i32, %arg1 : i32, i32, i32
  }
}

</mosaic_0001>

<llo_original>
// kernel: tpu_custom_call.1
$region0: #{tpu_custom_call.1}
  #allocation0 [shape = 'u32[]', space=smem, size = 0x4, offset = 0x4, fixed_abs, tag = 'smem constant byte address 0x4 - core index']
  #allocation1 [shape = 'u32[72,128]{1,0:T(1,128)}', space=vmem, size = 0x9000, scoped, tag = 'internal scratch']
  %s0 = inlined_call_operand.vmem [shape: f32[512,128], index: 0, kind: input, shape index: {}]
  %s1 = inlined_call_operand.vmem [shape: f32[512,1], index: 1, kind: input, shape index: {}]
  %s2 = inlined_call_operand.hbm [shape: f32[2,128,256], index: 2, kind: input, shape index: {}]
  %s3 = inlined_call_operand.hbm [shape: f32[2,512,256], index: 3, kind: output, shape index: {}]
  %s4 = sld [smem:[#allocation0]]
  $region49: #{tpu_custom_call.1} parent=0
    _
  %s6 = ssub.s32 1, %s4
  %s7 = scalar_select 0, %s6, %s4
  $region1: #{tpu_custom_call.1} parent=0
    #allocation2 [shape = 'u8[262144]{0}', space=vmem, size = 0x40000, scoped, tag = 'input window, operand 2']
    #allocation3 [shape = 's32[2]{0}', space=sflag, size = 0x8, scoped, tag = 'scoped memory for tpu_custom_call.1']
    #allocation4 [shape = 's32[2]{0}', space=sflag, size = 0x8, scoped, tag = 'scoped memory for tpu_custom_call.1']
    #allocation5 [shape = 'u8[1048576]{0}', space=vmem, size = 0x100000, scoped, tag = 'output window, operand 0']
    %8 = vsyncpa [#allocation3], 0
    %s9 = scalar_lea.sflag [#allocation3], 1
    %10 = vsyncpa %s9, 0
    %11 = vsyncpa [#allocation4], 0
    %s12 = scalar_lea.sflag [#allocation4], 1
    %13 = vsyncpa %s12, 0
    loop: start=0, step=1, limit=4
    $region2: #{tpu_custom_call.1} parent=1 // loop_pre_header
      _
    $region3: #{tpu_custom_call.1} parent=1 // loop_header
      %s15 = sphi 0, %s19
      %p16 = scmp.ge.s32.totalorder %s15, 4
      %s22 = sphi 0, %s34
      %s23 = sphi 0, %s30
      %s24 = sphi 0, %s22
      %s25 = sphi 0, %s23
      %s26 = sphi 0, %s24
      %s27 = sphi 0, %s25
      %s35 = sphi 0, %s35
      %s37 = sphi 0, %s35
      %s38 = sphi 0, %s37
      %s52 = sphi 0, %s38
      %s56 = sphi 0, %s56
      %s58 = sphi 0, %s56
      %s59 = sphi 0, %s58
      %s73 = sphi 0, %s59
      %s81 = sphi 0, %s83
      %s84 = sphi 0, %s81
      %s85 = sphi 0, %s84
      %s101 = sphi 0, %s85
      %s109 = sphi 0, %s111
      %s112 = sphi 0, %s109
      %s113 = sphi 0, %s112
      %s129 = sphi 0, %s113
    $region4: #{tpu_custom_call.1} parent=1 // loop_header_branch
      %18 = sbr.rel (%p16) target = $region8
    $region5: #{tpu_custom_call.1} parent=1 // loop_body
      %s20 = ssub.s32 %s15, 1
      %s21 = ssub.s32 %s15, 2
      %s28 = sadd.s32 1, %s23
      %p29 = scmp.ge.s32.totalorder %s28, 1
      %s30 = scalar_select %p29, 0, %s28
      %s31 = sadd.s32 1, %s22
      %s32 = scalar_select %p29, %s31, %s22
      %p33 = scmp.ge.s32.totalorder %s32, 2
      %s34 = scalar_select %p33, 0, %s32
      %s36 = sadd.s32 %s35, 1
      %p39 = scmp.eq.s32.totalorder %s15, 1
      %p40 = scmp.ne.s32.totalorder %s35, %s37
      %p41 = scmp.eq.s32.totalorder %s15, 0
      %p42 = por %p40, %p41
      %p43 = scmp.ne.s32.totalorder %s35, %s37
      %p44 = scmp.eq.s32.totalorder %s20, 1
      %p45 = por %p43, %p44
      %p46 = scmp.ne.s32.totalorder %s37, %s38
      %p47 = scmp.eq.s32.totalorder %s20, 0
      %p48 = por %p46, %p47
      %p49 = scmp.ne.s32.totalorder %s37, %s38
      %p50 = scmp.eq.s32.totalorder %s21, 1
      %p51 = por %p49, %p50
      %p53 = scmp.ne.s32.totalorder %s38, %s52
      %p54 = scmp.eq.s32.totalorder %s21, 0
      %p55 = por %p53, %p54
      %s57 = sadd.s32 %s56, 1
      %p60 = scmp.eq.s32.totalorder %s15, 1
      %p61 = scmp.ne.s32.totalorder %s56, %s58
      %p62 = scmp.eq.s32.totalorder %s15, 0
      %p63 = por %p61, %p62
      %p64 = scmp.ne.s32.totalorder %s56, %s58
      %p65 = scmp.eq.s32.totalorder %s20, 1
      %p66 = por %p64, %p65
      %p67 = scmp.ne.s32.totalorder %s58, %s59
      %p68 = scmp.eq.s32.totalorder %s20, 0
      %p69 = por %p67, %p68
      %p70 = scmp.ne.s32.totalorder %s58, %s59
      %p71 = scmp.eq.s32.totalorder %s21, 1
      %p72 = por %p70, %p71
      %p74 = scmp.ne.s32.totalorder %s59, %s73
      %p75 = scmp.eq.s32.totalorder %s21, 0
      %p76 = por %p74, %p75
      %s77 = ssub.s32 %s22, %s34
      %s78 = ssub.s32 %s23, %s30
      %s79 = sor.u32 %s77, %s78
      %p80 = scmp.eq.s32.totalorder %s79, 0
      %s82 = sadd.s32 %s81, 1
      %s83 = scalar_select %p80, %s81, %s82
      %p86 = pneg %p80
      %p87 = scmp.eq.s32.totalorder %s15, 1
      %p88 = por %p86, %p87
      %p89 = scmp.ne.s32.totalorder %s81, %s84
      %p90 = scmp.eq.s32.totalorder %s15, 0
      %p91 = por %p89, %p90
      %p92 = scmp.ne.s32.totalorder %s81, %s84
      %p93 = scmp.eq.s32.totalorder %s20, 1
      %p94 = por %p92, %p93
      %p95 = scmp.ne.s32.totalorder %s84, %s85
      %p96 = scmp.eq.s32.totalorder %s20, 0
      %p97 = por %p95, %p96
      %p98 = scmp.ne.s32.totalorder %s84, %s85
      %p99 = scmp.eq.s32.totalorder %s21, 1
      %p100 = por %p98, %p99
      %p102 = scmp.ne.s32.totalorder %s85, %s101
      %p103 = scmp.eq.s32.totalorder %s21, 0
      %p104 = por %p102, %p103
      %s105 = ssub.s32 %s22, %s34
      %s106 = ssub.s32 %s23, %s30
      %s107 = sor.u32 %s105, %s106
      %p108 = scmp.eq.s32.totalorder %s107, 0
      %s110 = sadd.s32 %s109, 1
      %s111 = scalar_select %p108, %s109, %s110
      %p114 = pneg %p108
      %p115 = scmp.eq.s32.totalorder %s15, 1
      %p116 = por %p114, %p115
      %p117 = scmp.ne.s32.totalorder %s109, %s112
      %p118 = scmp.eq.s32.totalorder %s15, 0
      %p119 = por %p117, %p118
      %p120 = scmp.ne.s32.totalorder %s109, %s112
      %p121 = scmp.eq.s32.totalorder %s20, 1
      %p122 = por %p120, %p121
      %p123 = scmp.ne.s32.totalorder %s112, %s113
      %p124 = scmp.eq.s32.totalorder %s20, 0
      %p125 = por %p123, %p124
      %p126 = scmp.ne.s32.totalorder %s112, %s113
      %p127 = scmp.eq.s32.totalorder %s21, 1
      %p128 = por %p126, %p127
      %p130 = scmp.ne.s32.totalorder %s113, %s129
      %p131 = scmp.eq.s32.totalorder %s21, 0
      %p132 = por %p130, %p131
      %p133 = scmp.le.s32.totalorder 1, %s15
      %p134 = scmp.lt.s32.totalorder %s15, 3
      %p135 = pnand %p133, %p134
      %p136 = pneg %p135
      // Predicated region
      $region9: #{tpu_custom_call.1} parent=5 // pred_check
        _
      $region10: #{tpu_custom_call.1} parent=5 // pred_check_branch
        %138 = sbr.rel (%p135) target = $region12
      $region11: #{tpu_custom_call.1} parent=5 // pred_region
        %s139 = ssub.s32 %s15, 1
        // Predicated region
        $region13: #{tpu_custom_call.1} parent=11 // pred_check
          %p140 = pneg %p48
        $region14: #{tpu_custom_call.1} parent=11 // pred_check_branch
          %142 = sbr.rel (%p140) target = $region16
        $region15: #{tpu_custom_call.1} parent=11 // pred_region
          _
        $region16: #{tpu_custom_call.1} parent=11 // pred_fallthru
          _
        // Predicated region
        $region17: #{tpu_custom_call.1} parent=11 // pred_check
          %p143 = pneg %p69
        $region18: #{tpu_custom_call.1} parent=11 // pred_check_branch
          %145 = sbr.rel (%p143) target = $region20
        $region19: #{tpu_custom_call.1} parent=11 // pred_region
          _
        $region20: #{tpu_custom_call.1} parent=11 // pred_fallthru
          _
      $region12: #{tpu_custom_call.1} parent=5 // pred_fallthru
        _
      %p146 = scmp.lt.s32.totalorder %s15, 2
      // Predicated region
      $region21: #{tpu_custom_call.1} parent=5 // pred_check
        %p147 = pneg %p146
      $region22: #{tpu_custom_call.1} parent=5 // pred_check_branch
        %149 = sbr.rel (%p147) target = $region24
      $region23: #{tpu_custom_call.1} parent=5 // pred_region
        // Predicated region
        $region25: #{tpu_custom_call.1} parent=23 // pred_check
          %p150 = pneg %p91
        $region26: #{tpu_custom_call.1} parent=23 // pred_check_branch
          %152 = sbr.rel (%p150) target = $region28
        $region27: #{tpu_custom_call.1} parent=23 // pred_region
          %s153 = sand.u32 %s81, 1
          %s154 = scalar_lea.sflag [#allocation3], %s153
          %s155 = sand.u32 %s81, 1
          %s156 = smul.addr %s155, 256
          %s157 = scalar_lea.vmem [#allocation2], %s156
          %s158 = smul.u32 2, %s23
          %160 = vsyncadd %s154, 0
          %s161 = smul.addr %s22, 32
          %s162 = sadd.s32 %s158, %s161
          %s163 = smul.addr %s162, 8
          %s164 = scalar_lea.hbm %s2, %s163
          %s165 = sshll.u32 %s164, 4
          %s166 = int_to_ptr.hbm [resolvable:$true] %s165
          %s167 = sshll.u32 %s157, 4
          %s168 = int_to_ptr.vmem [resolvable:$true] %s167
          %173 = dma.hbm_to_vmem [thread:$0]  %s166, 4096, %s168, %s154, 256, 256, 16
        $region28: #{tpu_custom_call.1} parent=23 // pred_fallthru
          _
      $region24: #{tpu_custom_call.1} parent=5 // pred_fallthru
        _
      %p174 = scmp.le.s32.totalorder 1, %s15
      %p175 = scmp.lt.s32.totalorder %s15, 3
      %p176 = pnand %p174, %p175
      %p177 = pneg %p176
      // Predicated region
      $region29: #{tpu_custom_call.1} parent=5 // pred_check
        _
      $region30: #{tpu_custom_call.1} parent=5 // pred_check_branch
        %179 = sbr.rel (%p176) target = $region32
      $region31: #{tpu_custom_call.1} parent=5 // pred_region
        %s180 = ssub.s32 %s15, 1
        %s181 = sand.u32 %s84, 1
        %s182 = scalar_lea.sflag [#allocation3], %s181
        %s183 = sand.u32 %s84, 1
        %s184 = smul.addr %s183, 256
        %s185 = scalar_lea.vmem [#allocation2], %s184
        // Predicated region
        $region33: #{tpu_custom_call.1} parent=31 // pred_check
          %p186 = pneg %p97
        $region34: #{tpu_custom_call.1} parent=31 // pred_check_branch
          %188 = sbr.rel (%p186) target = $region36
        $region35: #{tpu_custom_call.1} parent=31 // pred_region
          %190 = dma.done %s182, 4096
        $region36: #{tpu_custom_call.1} parent=31 // pred_fallthru
          _
        %p191 = pneg %p48
        %p192 = pneg %p45
        %p193 = pneg %p69
        %p194 = pneg %p66
        %s195 = sand.u32 %s84, 1
        %s196 = scalar_lea.sflag [#allocation3], %s195
        %s197 = sand.u32 %s84, 1
        %s198 = smul.addr %s197, 256
        %s199 = scalar_lea.vmem [#allocation2], %s198
        %p200 = pneg %p97
        %p201 = pneg %p94
        %p202 = pneg %p125
        %p203 = pneg %p122
        %s204 = sand.u32 %s112, 1
        %s205 = scalar_lea.sflag [#allocation4], %s204
        %s206 = sand.u32 %s112, 1
        %s207 = smul.addr %s206, 1024
        %s208 = scalar_lea.vmem [#allocation5], %s207
        %s209 = smul.u32 2, %s25
        %s210 = smul.u32 2, %s25
        %v211 = vld [vmem:[%s0] sm:$0xff]
        %v212 = vld [vmem:[%s0 + $0x8] sm:$0xff]
        %v213 = vld [vmem:[%s0 + $0x10] sm:$0xff]
        %v214 = vld [vmem:[%s0 + $0x18] sm:$0xff]
        %v215 = vld [vmem:[%s0 + $0x20] sm:$0xff]
        %v216 = vld [vmem:[%s0 + $0x28] sm:$0xff]
        %v217 = vld [vmem:[%s0 + $0x30] sm:$0xff]
        %v218 = vld [vmem:[%s0 + $0x38] sm:$0xff]
        %v219 = vld [vmem:[%s0 + $0x40] sm:$0xff]
        %v220 = vld [vmem:[%s0 + $0x48] sm:$0xff]
        %v221 = vld [vmem:[%s0 + $0x50] sm:$0xff]
        %v222 = vld [vmem:[%s0 + $0x58] sm:$0xff]
        %v223 = vld [vmem:[%s0 + $0x60] sm:$0xff]
        %v224 = vld [vmem:[%s0 + $0x68] sm:$0xff]
        %v225 = vld [vmem:[%s0 + $0x70] sm:$0xff]
        %v226 = vld [vmem:[%s0 + $0x78] sm:$0xff]
        %v227 = vld [vmem:[%s0 + $0x80] sm:$0xff]
        %v228 = vld [vmem:[%s0 + $0x88] sm:$0xff]
        %v229 = vld [vmem:[%s0 + $0x90] sm:$0xff]
        %v230 = vld [vmem:[%s0 + $0x98] sm:$0xff]
        %v231 = vld [vmem:[%s0 + $0xa0] sm:$0xff]
        %v232 = vld [vmem:[%s0 + $0xa8] sm:$0xff]
        %v233 = vld [vmem:[%s0 + $0xb0] sm:$0xff]
        %v234 = vld [vmem:[%s0 + $0xb8] sm:$0xff]
        %v235 = vld [vmem:[%s0 + $0xc0] sm:$0xff]
        %v236 = vld [vmem:[%s0 + $0xc8] sm:$0xff]
        %v237 = vld [vmem:[%s0 + $0xd0] sm:$0xff]
        %v238 = vld [vmem:[%s0 + $0xd8] sm:$0xff]
        %v239 = vld [vmem:[%s0 + $0xe0] sm:$0xff]
        %v240 = vld [vmem:[%s0 + $0xe8] sm:$0xff]
        %v241 = vld [vmem:[%s0 + $0xf0] sm:$0xff]
        %v242 = vld [vmem:[%s0 + $0xf8] sm:$0xff]
        %v243 = vld [vmem:[%s0 + $0x100] sm:$0xff]
        %v244 = vld [vmem:[%s0 + $0x108] sm:$0xff]
        %v245 = vld [vmem:[%s0 + $0x110] sm:$0xff]
        %v246 = vld [vmem:[%s0 + $0x118] sm:$0xff]
        %v247 = vld [vmem:[%s0 + $0x120] sm:$0xff]
        %v248 = vld [vmem:[%s0 + $0x128] sm:$0xff]
        %v249 = vld [vmem:[%s0 + $0x130] sm:$0xff]
        %v250 = vld [vmem:[%s0 + $0x138] sm:$0xff]
        %v251 = vld [vmem:[%s0 + $0x140] sm:$0xff]
        %v252 = vld [vmem:[%s0 + $0x148] sm:$0xff]
        %v253 = vld [vmem:[%s0 + $0x150] sm:$0xff]
        %v254 = vld [vmem:[%s0 + $0x158] sm:$0xff]
        %v255 = vld [vmem:[%s0 + $0x160] sm:$0xff]
        %v256 = vld [vmem:[%s0 + $0x168] sm:$0xff]
        %v257 = vld [vmem:[%s0 + $0x170] sm:$0xff]
        %v258 = vld [vmem:[%s0 + $0x178] sm:$0xff]
        %v259 = vld [vmem:[%s0 + $0x180] sm:$0xff]
        %v260 = vld [vmem:[%s0 + $0x188] sm:$0xff]
        %v261 = vld [vmem:[%s0 + $0x190] sm:$0xff]
        %v262 = vld [vmem:[%s0 + $0x198] sm:$0xff]
        %v263 = vld [vmem:[%s0 + $0x1a0] sm:$0xff]
        %v264 = vld [vmem:[%s0 + $0x1a8] sm:$0xff]
        %v265 = vld [vmem:[%s0 + $0x1b0] sm:$0xff]
        %v266 = vld [vmem:[%s0 + $0x1b8] sm:$0xff]
        %v267 = vld [vmem:[%s0 + $0x1c0] sm:$0xff]
        %v268 = vld [vmem:[%s0 + $0x1c8] sm:$0xff]
        %v269 = vld [vmem:[%s0 + $0x1d0] sm:$0xff]
        %v270 = vld [vmem:[%s0 + $0x1d8] sm:$0xff]
        %v271 = vld [vmem:[%s0 + $0x1e0] sm:$0xff]
        %v272 = vld [vmem:[%s0 + $0x1e8] sm:$0xff]
        %v273 = vld [vmem:[%s0 + $0x1f0] sm:$0xff]
        %v274 = vld [vmem:[%s0 + $0x1f8] sm:$0xff]
        %v275 = vld [vmem:[%s185] sm:$0xff]
        %v276 = vld [vmem:[%s185 + $0x8] sm:$0xff]
        %v277 = vld [vmem:[%s185 + $0x10] sm:$0xff]
        %v278 = vld [vmem:[%s185 + $0x18] sm:$0xff]
        %v279 = vld [vmem:[%s185 + $0x20] sm:$0xff]
        %v280 = vld [vmem:[%s185 + $0x28] sm:$0xff]
        %v281 = vld [vmem:[%s185 + $0x30] sm:$0xff]
        %v282 = vld [vmem:[%s185 + $0x38] sm:$0xff]
        %v283 = vld [vmem:[%s185 + $0x40] sm:$0xff]
        %v284 = vld [vmem:[%s185 + $0x48] sm:$0xff]
        %v285 = vld [vmem:[%s185 + $0x50] sm:$0xff]
        %v286 = vld [vmem:[%s185 + $0x58] sm:$0xff]
        %v287 = vld [vmem:[%s185 + $0x60] sm:$0xff]
        %v288 = vld [vmem:[%s185 + $0x68] sm:$0xff]
        %v289 = vld [vmem:[%s185 + $0x70] sm:$0xff]
        %v290 = vld [vmem:[%s185 + $0x78] sm:$0xff]
        %v291 = vld [vmem:[%s185 + $0x80] sm:$0xff]
        %v292 = vld [vmem:[%s185 + $0x88] sm:$0xff]
        %v293 = vld [vmem:[%s185 + $0x90] sm:$0xff]
        %v294 = vld [vmem:[%s185 + $0x98] sm:$0xff]
        %v295 = vld [vmem:[%s185 + $0xa0] sm:$0xff]
        %v296 = vld [vmem:[%s185 + $0xa8] sm:$0xff]
        %v297 = vld [vmem:[%s185 + $0xb0] sm:$0xff]
        %v298 = vld [vmem:[%s185 + $0xb8] sm:$0xff]
        %v299 = vld [vmem:[%s185 + $0xc0] sm:$0xff]
        %v300 = vld [vmem:[%s185 + $0xc8] sm:$0xff]
        %v301 = vld [vmem:[%s185 + $0xd0] sm:$0xff]
        %v302 = vld [vmem:[%s185 + $0xd8] sm:$0xff]
        %v303 = vld [vmem:[%s185 + $0xe0] sm:$0xff]
        %v304 = vld [vmem:[%s185 + $0xe8] sm:$0xff]
        %v305 = vld [vmem:[%s185 + $0xf0] sm:$0xff]
        %v306 = vld [vmem:[%s185 + $0xf8] sm:$0xff]
        %v307 = vld [vmem:[%s1] sm:$0xff]
        %v308 = vld [vmem:[%s1 + $0x8] sm:$0xff]
        %v309 = vld [vmem:[%s1 + $0x10] sm:$0xff]
        %v310 = vld [vmem:[%s1 + $0x18] sm:$0xff]
        %v311 = vld [vmem:[%s1 + $0x20] sm:$0xff]
        %v312 = vld [vmem:[%s1 + $0x28] sm:$0xff]
        %v313 = vld [vmem:[%s1 + $0x30] sm:$0xff]
        %v314 = vld [vmem:[%s1 + $0x38] sm:$0xff]
        %v315 = vld [vmem:[%s1 + $0x40] sm:$0xff]
        %v316 = vld [vmem:[%s1 + $0x48] sm:$0xff]
        %v317 = vld [vmem:[%s1 + $0x50] sm:$0xff]
        %v318 = vld [vmem:[%s1 + $0x58] sm:$0xff]
        %v319 = vld [vmem:[%s1 + $0x60] sm:$0xff]
        %v320 = vld [vmem:[%s1 + $0x68] sm:$0xff]
        %v321 = vld [vmem:[%s1 + $0x70] sm:$0xff]
        %v322 = vld [vmem:[%s1 + $0x78] sm:$0xff]
        %v323 = vld [vmem:[%s1 + $0x80] sm:$0xff]
        %v324 = vld [vmem:[%s1 + $0x88] sm:$0xff]
        %v325 = vld [vmem:[%s1 + $0x90] sm:$0xff]
        %v326 = vld [vmem:[%s1 + $0x98] sm:$0xff]
        %v327 = vld [vmem:[%s1 + $0xa0] sm:$0xff]
        %v328 = vld [vmem:[%s1 + $0xa8] sm:$0xff]
        %v329 = vld [vmem:[%s1 + $0xb0] sm:$0xff]
        %v330 = vld [vmem:[%s1 + $0xb8] sm:$0xff]
        %v331 = vld [vmem:[%s1 + $0xc0] sm:$0xff]
        %v332 = vld [vmem:[%s1 + $0xc8] sm:$0xff]
        %v333 = vld [vmem:[%s1 + $0xd0] sm:$0xff]
        %v334 = vld [vmem:[%s1 + $0xd8] sm:$0xff]
        %v335 = vld [vmem:[%s1 + $0xe0] sm:$0xff]
        %v336 = vld [vmem:[%s1 + $0xe8] sm:$0xff]
        %v337 = vld [vmem:[%s1 + $0xf0] sm:$0xff]
        %v338 = vld [vmem:[%s1 + $0xf8] sm:$0xff]
        %v339 = vld [vmem:[%s1 + $0x100] sm:$0xff]
        %v340 = vld [vmem:[%s1 + $0x108] sm:$0xff]
        %v341 = vld [vmem:[%s1 + $0x110] sm:$0xff]
        %v342 = vld [vmem:[%s1 + $0x118] sm:$0xff]
        %v343 = vld [vmem:[%s1 + $0x120] sm:$0xff]
        %v344 = vld [vmem:[%s1 + $0x128] sm:$0xff]
        %v345 = vld [vmem:[%s1 + $0x130] sm:$0xff]
        %v346 = vld [vmem:[%s1 + $0x138] sm:$0xff]
        %v347 = vld [vmem:[%s1 + $0x140] sm:$0xff]
        %v348 = vld [vmem:[%s1 + $0x148] sm:$0xff]
        %v349 = vld [vmem:[%s1 + $0x150] sm:$0xff]
        %v350 = vld [vmem:[%s1 + $0x158] sm:$0xff]
        %v351 = vld [vmem:[%s1 + $0x160] sm:$0xff]
        %v352 = vld [vmem:[%s1 + $0x168] sm:$0xff]
        %v353 = vld [vmem:[%s1 + $0x170] sm:$0xff]
        %v354 = vld [vmem:[%s1 + $0x178] sm:$0xff]
        %v355 = vld [vmem:[%s1 + $0x180] sm:$0xff]
        %v356 = vld [vmem:[%s1 + $0x188] sm:$0xff]
        %v357 = vld [vmem:[%s1 + $0x190] sm:$0xff]
        %v358 = vld [vmem:[%s1 + $0x198] sm:$0xff]
        %v359 = vld [vmem:[%s1 + $0x1a0] sm:$0xff]
        %v360 = vld [vmem:[%s1 + $0x1a8] sm:$0xff]
        %v361 = vld [vmem:[%s1 + $0x1b0] sm:$0xff]
        %v362 = vld [vmem:[%s1 + $0x1b8] sm:$0xff]
        %v363 = vld [vmem:[%s1 + $0x1c0] sm:$0xff]
        %v364 = vld [vmem:[%s1 + $0x1c8] sm:$0xff]
        %v365 = vld [vmem:[%s1 + $0x1d0] sm:$0xff]
        %v366 = vld [vmem:[%s1 + $0x1d8] sm:$0xff]
        %v367 = vld [vmem:[%s1 + $0x1e0] sm:$0xff]
        %v368 = vld [vmem:[%s1 + $0x1e8] sm:$0xff]
        %v369 = vld [vmem:[%s1 + $0x1f0] sm:$0xff]
        %v370 = vld [vmem:[%s1 + $0x1f8] sm:$0xff]
        %372 = vset.pattern.permute.xlu0 0
        %373 = vperm.xlu0 %372, %v307
        %v374 = vpop.permute.xlu0 %373
        %377 = vset.pattern.permute.xlu0 0
        %378 = vperm.xlu0 %377, %v308
        %v379 = vpop.permute.xlu0 %378
        %382 = vset.pattern.permute.xlu0 0
        %383 = vperm.xlu0 %382, %v309
        %v384 = vpop.permute.xlu0 %383
        %387 = vset.pattern.permute.xlu0 0
        %388 = vperm.xlu0 %387, %v310
        %v389 = vpop.permute.xlu0 %388
        %392 = vset.pattern.permute.xlu0 0
        %393 = vperm.xlu0 %392, %v311
        %v394 = vpop.permute.xlu0 %393
        %397 = vset.pattern.permute.xlu0 0
        %398 = vperm.xlu0 %397, %v312
        %v399 = vpop.permute.xlu0 %398
        %402 = vset.pattern.permute.xlu0 0
        %403 = vperm.xlu0 %402, %v313
        %v404 = vpop.permute.xlu0 %403
        %407 = vset.pattern.permute.xlu0 0
        %408 = vperm.xlu0 %407, %v314
        %v409 = vpop.permute.xlu0 %408
        %412 = vset.pattern.permute.xlu0 0
        %413 = vperm.xlu0 %412, %v315
        %v414 = vpop.permute.xlu0 %413
        %417 = vset.pattern.permute.xlu0 0
        %418 = vperm.xlu0 %417, %v316
        %v419 = vpop.permute.xlu0 %418
        %422 = vset.pattern.permute.xlu0 0
        %423 = vperm.xlu0 %422, %v317
        %v424 = vpop.permute.xlu0 %423
        %427 = vset.pattern.permute.xlu0 0
        %428 = vperm.xlu0 %427, %v318
        %v429 = vpop.permute.xlu0 %428
        %432 = vset.pattern.permute.xlu0 0
        %433 = vperm.xlu0 %432, %v319
        %v434 = vpop.permute.xlu0 %433
        %437 = vset.pattern.permute.xlu0 0
        %438 = vperm.xlu0 %437, %v320
        %v439 = vpop.permute.xlu0 %438
        %442 = vset.pattern.permute.xlu0 0
        %443 = vperm.xlu0 %442, %v321
        %v444 = vpop.permute.xlu0 %443
        %447 = vset.pattern.permute.xlu0 0
        %448 = vperm.xlu0 %447, %v322
        %v449 = vpop.permute.xlu0 %448
        %452 = vset.pattern.permute.xlu0 0
        %453 = vperm.xlu0 %452, %v323
        %v454 = vpop.permute.xlu0 %453
        %457 = vset.pattern.permute.xlu0 0
        %458 = vperm.xlu0 %457, %v324
        %v459 = vpop.permute.xlu0 %458
        %462 = vset.pattern.permute.xlu0 0
        %463 = vperm.xlu0 %462, %v325
        %v464 = vpop.permute.xlu0 %463
        %467 = vset.pattern.permute.xlu0 0
        %468 = vperm.xlu0 %467, %v326
        %v469 = vpop.permute.xlu0 %468
        %472 = vset.pattern.permute.xlu0 0
        %473 = vperm.xlu0 %472, %v327
        %v474 = vpop.permute.xlu0 %473
        %477 = vset.pattern.permute.xlu0 0
        %478 = vperm.xlu0 %477, %v328
        %v479 = vpop.permute.xlu0 %478
        %482 = vset.pattern.permute.xlu0 0
        %483 = vperm.xlu0 %482, %v329
        %v484 = vpop.permute.xlu0 %483
        %487 = vset.pattern.permute.xlu0 0
        %488 = vperm.xlu0 %487, %v330
        %v489 = vpop.permute.xlu0 %488
        %492 = vset.pattern.permute.xlu0 0
        %493 = vperm.xlu0 %492, %v331
        %v494 = vpop.permute.xlu0 %493
        %497 = vset.pattern.permute.xlu0 0
        %498 = vperm.xlu0 %497, %v332
        %v499 = vpop.permute.xlu0 %498
        %502 = vset.pattern.permute.xlu0 0
        %503 = vperm.xlu0 %502, %v333
        %v504 = vpop.permute.xlu0 %503
        %507 = vset.pattern.permute.xlu0 0
        %508 = vperm.xlu0 %507, %v334
        %v509 = vpop.permute.xlu0 %508
        %512 = vset.pattern.permute.xlu0 0
        %513 = vperm.xlu0 %512, %v335
        %v514 = vpop.permute.xlu0 %513
        %517 = vset.pattern.permute.xlu0 0
        %518 = vperm.xlu0 %517, %v336
        %v519 = vpop.permute.xlu0 %518
        %522 = vset.pattern.permute.xlu0 0
        %523 = vperm.xlu0 %522, %v337
        %v524 = vpop.permute.xlu0 %523
        %527 = vset.pattern.permute.xlu0 0
        %528 = vperm.xlu0 %527, %v338
        %v529 = vpop.permute.xlu0 %528
        %532 = vset.pattern.permute.xlu0 0
        %533 = vperm.xlu0 %532, %v339
        %v534 = vpop.permute.xlu0 %533
        %537 = vset.pattern.permute.xlu0 0
        %538 = vperm.xlu0 %537, %v340
        %v539 = vpop.permute.xlu0 %538
        %542 = vset.pattern.permute.xlu0 0
        %543 = vperm.xlu0 %542, %v341
        %v544 = vpop.permute.xlu0 %543
        %547 = vset.pattern.permute.xlu0 0
        %548 = vperm.xlu0 %547, %v342
        %v549 = vpop.permute.xlu0 %548
        %552 = vset.pattern.permute.xlu0 0
        %553 = vperm.xlu0 %552, %v343
        %v554 = vpop.permute.xlu0 %553
        %557 = vset.pattern.permute.xlu0 0
        %558 = vperm.xlu0 %557, %v344
        %v559 = vpop.permute.xlu0 %558
        %562 = vset.pattern.permute.xlu0 0
        %563 = vperm.xlu0 %562, %v345
        %v564 = vpop.permute.xlu0 %563
        %567 = vset.pattern.permute.xlu0 0
        %568 = vperm.xlu0 %567, %v346
        %v569 = vpop.permute.xlu0 %568
        %572 = vset.pattern.permute.xlu0 0
        %573 = vperm.xlu0 %572, %v347
        %v574 = vpop.permute.xlu0 %573
        %577 = vset.pattern.permute.xlu0 0
        %578 = vperm.xlu0 %577, %v348
        %v579 = vpop.permute.xlu0 %578
        %582 = vset.pattern.permute.xlu0 0
        %583 = vperm.xlu0 %582, %v349
        %v584 = vpop.permute.xlu0 %583
        %587 = vset.pattern.permute.xlu0 0
        %588 = vperm.xlu0 %587, %v350
        %v589 = vpop.permute.xlu0 %588
        %592 = vset.pattern.permute.xlu0 0
        %593 = vperm.xlu0 %592, %v351
        %v594 = vpop.permute.xlu0 %593
        %597 = vset.pattern.permute.xlu0 0
        %598 = vperm.xlu0 %597, %v352
        %v599 = vpop.permute.xlu0 %598
        %602 = vset.pattern.permute.xlu0 0
        %603 = vperm.xlu0 %602, %v353
        %v604 = vpop.permute.xlu0 %603
        %607 = vset.pattern.permute.xlu0 0
        %608 = vperm.xlu0 %607, %v354
        %v609 = vpop.permute.xlu0 %608
        %612 = vset.pattern.permute.xlu0 0
        %613 = vperm.xlu0 %612, %v355
        %v614 = vpop.permute.xlu0 %613
        %617 = vset.pattern.permute.xlu0 0
        %618 = vperm.xlu0 %617, %v356
        %v619 = vpop.permute.xlu0 %618
        %622 = vset.pattern.permute.xlu0 0
        %623 = vperm.xlu0 %622, %v357
        %v624 = vpop.permute.xlu0 %623
        %627 = vset.pattern.permute.xlu0 0
        %628 = vperm.xlu0 %627, %v358
        %v629 = vpop.permute.xlu0 %628
        %632 = vset.pattern.permute.xlu0 0
        %633 = vperm.xlu0 %632, %v359
        %v634 = vpop.permute.xlu0 %633
        %637 = vset.pattern.permute.xlu0 0
        %638 = vperm.xlu0 %637, %v360
        %v639 = vpop.permute.xlu0 %638
        %642 = vset.pattern.permute.xlu0 0
        %643 = vperm.xlu0 %642, %v361
        %v644 = vpop.permute.xlu0 %643
        %647 = vset.pattern.permute.xlu0 0
        %648 = vperm.xlu0 %647, %v362
        %v649 = vpop.permute.xlu0 %648
        %652 = vset.pattern.permute.xlu0 0
        %653 = vperm.xlu0 %652, %v363
        %v654 = vpop.permute.xlu0 %653
        %657 = vset.pattern.permute.xlu0 0
        %658 = vperm.xlu0 %657, %v364
        %v659 = vpop.permute.xlu0 %658
        %662 = vset.pattern.permute.xlu0 0
        %663 = vperm.xlu0 %662, %v365
        %v664 = vpop.permute.xlu0 %663
        %667 = vset.pattern.permute.xlu0 0
        %668 = vperm.xlu0 %667, %v366
        %v669 = vpop.permute.xlu0 %668
        %672 = vset.pattern.permute.xlu0 0
        %673 = vperm.xlu0 %672, %v367
        %v674 = vpop.permute.xlu0 %673
        %677 = vset.pattern.permute.xlu0 0
        %678 = vperm.xlu0 %677, %v368
        %v679 = vpop.permute.xlu0 %678
        %682 = vset.pattern.permute.xlu0 0
        %683 = vperm.xlu0 %682, %v369
        %v684 = vpop.permute.xlu0 %683
        %687 = vset.pattern.permute.xlu0 0
        %688 = vperm.xlu0 %687, %v370
        %v689 = vpop.permute.xlu0 %688
        %691 = vmatpush.msra.mxu0 %v305
        %692 = vmatpush.msra.mxu0 %v303
        %693 = vmatpush.msra.mxu0 %v301
        %694 = vmatpush.msra.mxu0 %v299
        %695 = vmatpush.msra.mxu0 %v297
        %696 = vmatpush.msra.mxu0 %v295
        %697 = vmatpush.msra.mxu0 %v293
        %698 = vmatpush.msra.mxu0 %v291
        %699 = vmatpush.msra.mxu0 %v289
        %700 = vmatpush.msra.mxu0 %v287
        %701 = vmatpush.msra.mxu0 %v285
        %702 = vmatpush.msra.mxu0 %v283
        %703 = vmatpush.msra.mxu0 %v281
        %704 = vmatpush.msra.mxu0 %v279
        %705 = vmatpush.msra.mxu0 %v277
        %706 = vmatpush.msra.mxu0 %v275
        %707 = vmatmul.f32.gmra.mxu0 %v211
        %v708 = vpop.f32.mrf.mxu0
        %v709 = vadd.f32 %v374, %v708
        %710 = vmatmul.f32.gmra.mxu0 %v212
        %v711 = vpop.f32.mrf.mxu0
        %v712 = vadd.f32 %v379, %v711
        %713 = vmatmul.f32.gmra.mxu0 %v213
        %v714 = vpop.f32.mrf.mxu0
        %v715 = vadd.f32 %v384, %v714
        %716 = vmatmul.f32.gmra.mxu0 %v214
        %v717 = vpop.f32.mrf.mxu0
        %v718 = vadd.f32 %v389, %v717
        %719 = vmatmul.f32.gmra.mxu0 %v215
        %v720 = vpop.f32.mrf.mxu0
        %v721 = vadd.f32 %v394, %v720
        %722 = vmatmul.f32.gmra.mxu0 %v216
        %v723 = vpop.f32.mrf.mxu0
        %v724 = vadd.f32 %v399, %v723
        %725 = vmatmul.f32.gmra.mxu0 %v217
        %v726 = vpop.f32.mrf.mxu0
        %v727 = vadd.f32 %v404, %v726
        %728 = vmatmul.f32.gmra.mxu0 %v218
        %v729 = vpop.f32.mrf.mxu0
        %v730 = vadd.f32 %v409, %v729
        %731 = vmatmul.f32.gmra.mxu0 %v219
        %v732 = vpop.f32.mrf.mxu0
        %v733 = vadd.f32 %v414, %v732
        %734 = vmatmul.f32.gmra.mxu0 %v220
        %v735 = vpop.f32.mrf.mxu0
        %v736 = vadd.f32 %v419, %v735
        %737 = vmatmul.f32.gmra.mxu0 %v221
        %v738 = vpop.f32.mrf.mxu0
        %v739 = vadd.f32 %v424, %v738
        %740 = vmatmul.f32.gmra.mxu0 %v222
        %v741 = vpop.f32.mrf.mxu0
        %v742 = vadd.f32 %v429, %v741
        %743 = vmatmul.f32.gmra.mxu0 %v223
        %v744 = vpop.f32.mrf.mxu0
        %v745 = vadd.f32 %v434, %v744
        %746 = vmatmul.f32.gmra.mxu0 %v224
        %v747 = vpop.f32.mrf.mxu0
        %v748 = vadd.f32 %v439, %v747
        %749 = vmatmul.f32.gmra.mxu0 %v225
        %v750 = vpop.f32.mrf.mxu0
        %v751 = vadd.f32 %v444, %v750
        %752 = vmatmul.f32.gmra.mxu0 %v226
        %v753 = vpop.f32.mrf.mxu0
        %v754 = vadd.f32 %v449, %v753
        %755 = vmatmul.f32.gmra.mxu0 %v227
        %v756 = vpop.f32.mrf.mxu0
        %v757 = vadd.f32 %v454, %v756
        %758 = vmatmul.f32.gmra.mxu0 %v228
        %v759 = vpop.f32.mrf.mxu0
        %v760 = vadd.f32 %v459, %v759
        %761 = vmatmul.f32.gmra.mxu0 %v229
        %v762 = vpop.f32.mrf.mxu0
        %v763 = vadd.f32 %v464, %v762
        %764 = vmatmul.f32.gmra.mxu0 %v230
        %v765 = vpop.f32.mrf.mxu0
        %v766 = vadd.f32 %v469, %v765
        %767 = vmatmul.f32.gmra.mxu0 %v231
        %v768 = vpop.f32.mrf.mxu0
        %v769 = vadd.f32 %v474, %v768
        %770 = vmatmul.f32.gmra.mxu0 %v232
        %v771 = vpop.f32.mrf.mxu0
        %v772 = vadd.f32 %v479, %v771
        %773 = vmatmul.f32.gmra.mxu0 %v233
        %v774 = vpop.f32.mrf.mxu0
        %v775 = vadd.f32 %v484, %v774
        %776 = vmatmul.f32.gmra.mxu0 %v234
        %v777 = vpop.f32.mrf.mxu0
        %v778 = vadd.f32 %v489, %v777
        %779 = vmatmul.f32.gmra.mxu0 %v235
        %v780 = vpop.f32.mrf.mxu0
        %v781 = vadd.f32 %v494, %v780
        %782 = vmatmul.f32.gmra.mxu0 %v236
        %v783 = vpop.f32.mrf.mxu0
        %v784 = vadd.f32 %v499, %v783
        %785 = vmatmul.f32.gmra.mxu0 %v237
        %v786 = vpop.f32.mrf.mxu0
        %v787 = vadd.f32 %v504, %v786
        %788 = vmatmul.f32.gmra.mxu0 %v238
        %v789 = vpop.f32.mrf.mxu0
        %v790 = vadd.f32 %v509, %v789
        %791 = vmatmul.f32.gmra.mxu0 %v239
        %v792 = vpop.f32.mrf.mxu0
        %v793 = vadd.f32 %v514, %v792
        %794 = vmatmul.f32.gmra.mxu0 %v240
        %v795 = vpop.f32.mrf.mxu0
        %v796 = vadd.f32 %v519, %v795
        %797 = vmatmul.f32.gmra.mxu0 %v241
        %v798 = vpop.f32.mrf.mxu0
        %v799 = vadd.f32 %v524, %v798
        %800 = vmatmul.f32.gmra.mxu0 %v242
        %v801 = vpop.f32.mrf.mxu0
        %v802 = vadd.f32 %v529, %v801
        %803 = vmatmul.f32.gmra.mxu0 %v243
        %v804 = vpop.f32.mrf.mxu0
        %v805 = vadd.f32 %v534, %v804
        %806 = vmatmul.f32.gmra.mxu0 %v244
        %v807 = vpop.f32.mrf.mxu0
        %v808 = vadd.f32 %v539, %v807
        %809 = vmatmul.f32.gmra.mxu0 %v245
        %v810 = vpop.f32.mrf.mxu0
        %v811 = vadd.f32 %v544, %v810
        %812 = vmatmul.f32.gmra.mxu0 %v246
        %v813 = vpop.f32.mrf.mxu0
        %v814 = vadd.f32 %v549, %v813
        %815 = vmatmul.f32.gmra.mxu0 %v247
        %v816 = vpop.f32.mrf.mxu0
        %v817 = vadd.f32 %v554, %v816
        %818 = vmatmul.f32.gmra.mxu0 %v248
        %v819 = vpop.f32.mrf.mxu0
        %v820 = vadd.f32 %v559, %v819
        %821 = vmatmul.f32.gmra.mxu0 %v249
        %v822 = vpop.f32.mrf.mxu0
        %v823 = vadd.f32 %v564, %v822
        %824 = vmatmul.f32.gmra.mxu0 %v250
        %v825 = vpop.f32.mrf.mxu0
        %v826 = vadd.f32 %v569, %v825
        %827 = vmatmul.f32.gmra.mxu0 %v251
        %v828 = vpop.f32.mrf.mxu0
        %v829 = vadd.f32 %v574, %v828
        %830 = vmatmul.f32.gmra.mxu0 %v252
        %v831 = vpop.f32.mrf.mxu0
        %v832 = vadd.f32 %v579, %v831
        %833 = vmatmul.f32.gmra.mxu0 %v253
        %v834 = vpop.f32.mrf.mxu0
        %v835 = vadd.f32 %v584, %v834
        %836 = vmatmul.f32.gmra.mxu0 %v254
        %v837 = vpop.f32.mrf.mxu0
        %v838 = vadd.f32 %v589, %v837
        %839 = vmatmul.f32.gmra.mxu0 %v255
        %v840 = vpop.f32.mrf.mxu0
        %v841 = vadd.f32 %v594, %v840
        %842 = vmatmul.f32.gmra.mxu0 %v256
        %v843 = vpop.f32.mrf.mxu0
        %v844 = vadd.f32 %v599, %v843
        %845 = vmatmul.f32.gmra.mxu0 %v257
        %v846 = vpop.f32.mrf.mxu0
        %v847 = vadd.f32 %v604, %v846
        %848 = vmatmul.f32.gmra.mxu0 %v258
        %v849 = vpop.f32.mrf.mxu0
        %v850 = vadd.f32 %v609, %v849
        %851 = vmatmul.f32.gmra.mxu0 %v259
        %v852 = vpop.f32.mrf.mxu0
        %v853 = vadd.f32 %v614, %v852
        %854 = vmatmul.f32.gmra.mxu0 %v260
        %v855 = vpop.f32.mrf.mxu0
        %v856 = vadd.f32 %v619, %v855
        %857 = vmatmul.f32.gmra.mxu0 %v261
        %v858 = vpop.f32.mrf.mxu0
        %v859 = vadd.f32 %v624, %v858
        %860 = vmatmul.f32.gmra.mxu0 %v262
        %v861 = vpop.f32.mrf.mxu0
        %v862 = vadd.f32 %v629, %v861
        %863 = vmatmul.f32.gmra.mxu0 %v263
        %v864 = vpop.f32.mrf.mxu0
        %v865 = vadd.f32 %v634, %v864
        %866 = vmatmul.f32.gmra.mxu0 %v264
        %v867 = vpop.f32.mrf.mxu0
        %v868 = vadd.f32 %v639, %v867
        %869 = vmatmul.f32.gmra.mxu0 %v265
        %v870 = vpop.f32.mrf.mxu0
        %v871 = vadd.f32 %v644, %v870
        %872 = vmatmul.f32.gmra.mxu0 %v266
        %v873 = vpop.f32.mrf.mxu0
        %v874 = vadd.f32 %v649, %v873
        %875 = vmatmul.f32.gmra.mxu0 %v267
        %v876 = vpop.f32.mrf.mxu0
        %v877 = vadd.f32 %v654, %v876
        %878 = vmatmul.f32.gmra.mxu0 %v268
        %v879 = vpop.f32.mrf.mxu0
        %v880 = vadd.f32 %v659, %v879
        %881 = vmatmul.f32.gmra.mxu0 %v269
        %v882 = vpop.f32.mrf.mxu0
        %v883 = vadd.f32 %v664, %v882
        %884 = vmatmul.f32.gmra.mxu0 %v270
        %v885 = vpop.f32.mrf.mxu0
        %v886 = vadd.f32 %v669, %v885
        %887 = vmatmul.f32.gmra.mxu0 %v271
        %v888 = vpop.f32.mrf.mxu0
        %v889 = vadd.f32 %v674, %v888
        %890 = vmatmul.f32.gmra.mxu0 %v272
        %v891 = vpop.f32.mrf.mxu0
        %v892 = vadd.f32 %v679, %v891
        %893 = vmatmul.f32.gmra.mxu0 %v273
        %v894 = vpop.f32.mrf.mxu0
        %v895 = vadd.f32 %v684, %v894
        %896 = vmatmul.f32.gmra.mxu0 %v274
        %v897 = vpop.f32.mrf.mxu0
        %v898 = vadd.f32 %v689, %v897
        %899 = vdwg.mxu0
        %900 = vmatpush.msra.mxu0 %v306
        %901 = vmatpush.msra.mxu0 %v304
        %902 = vmatpush.msra.mxu0 %v302
        %903 = vmatpush.msra.mxu0 %v300
        %904 = vmatpush.msra.mxu0 %v298
        %905 = vmatpush.msra.mxu0 %v296
        %906 = vmatpush.msra.mxu0 %v294
        %907 = vmatpush.msra.mxu0 %v292
        %908 = vmatpush.msra.mxu0 %v290
        %909 = vmatpush.msra.mxu0 %v288
        %910 = vmatpush.msra.mxu0 %v286
        %911 = vmatpush.msra.mxu0 %v284
        %912 = vmatpush.msra.mxu0 %v282
        %913 = vmatpush.msra.mxu0 %v280
        %914 = vmatpush.msra.mxu0 %v278
        %915 = vmatpush.msra.mxu0 %v276
        %916 = vmatmul.f32.gmra.mxu0 %v211
        %v917 = vpop.f32.mrf.mxu0
        %v918 = vadd.f32 %v374, %v917
        %919 = vmatmul.f32.gmra.mxu0 %v212
        %v920 = vpop.f32.mrf.mxu0
        %v921 = vadd.f32 %v379, %v920
        %922 = vmatmul.f32.gmra.mxu0 %v213
        %v923 = vpop.f32.mrf.mxu0
        %v924 = vadd.f32 %v384, %v923
        %925 = vmatmul.f32.gmra.mxu0 %v214
        %v926 = vpop.f32.mrf.mxu0
        %v927 = vadd.f32 %v389, %v926
        %928 = vmatmul.f32.gmra.mxu0 %v215
        %v929 = vpop.f32.mrf.mxu0
        %v930 = vadd.f32 %v394, %v929
        %931 = vmatmul.f32.gmra.mxu0 %v216
        %v932 = vpop.f32.mrf.mxu0
        %v933 = vadd.f32 %v399, %v932
        %934 = vmatmul.f32.gmra.mxu0 %v217
        %v935 = vpop.f32.mrf.mxu0
        %v936 = vadd.f32 %v404, %v935
        %937 = vmatmul.f32.gmra.mxu0 %v218
        %v938 = vpop.f32.mrf.mxu0
        %v939 = vadd.f32 %v409, %v938
        %940 = vmatmul.f32.gmra.mxu0 %v219
        %v941 = vpop.f32.mrf.mxu0
        %v942 = vadd.f32 %v414, %v941
        %943 = vmatmul.f32.gmra.mxu0 %v220
        %v944 = vpop.f32.mrf.mxu0
        %v945 = vadd.f32 %v419, %v944
        %946 = vmatmul.f32.gmra.mxu0 %v221
        %v947 = vpop.f32.mrf.mxu0
        %v948 = vadd.f32 %v424, %v947
        %949 = vmatmul.f32.gmra.mxu0 %v222
        %v950 = vpop.f32.mrf.mxu0
        %v951 = vadd.f32 %v429, %v950
        %952 = vmatmul.f32.gmra.mxu0 %v223
        %v953 = vpop.f32.mrf.mxu0
        %v954 = vadd.f32 %v434, %v953
        %955 = vmatmul.f32.gmra.mxu0 %v224
        %v956 = vpop.f32.mrf.mxu0
        %v957 = vadd.f32 %v439, %v956
        %958 = vmatmul.f32.gmra.mxu0 %v225
        %v959 = vpop.f32.mrf.mxu0
        %v960 = vadd.f32 %v444, %v959
        %961 = vmatmul.f32.gmra.mxu0 %v226
        %v962 = vpop.f32.mrf.mxu0
        %v963 = vadd.f32 %v449, %v962
        %964 = vmatmul.f32.gmra.mxu0 %v227
        %v965 = vpop.f32.mrf.mxu0
        %v966 = vadd.f32 %v454, %v965
        %967 = vmatmul.f32.gmra.mxu0 %v228
        %v968 = vpop.f32.mrf.mxu0
        %v969 = vadd.f32 %v459, %v968
        %970 = vmatmul.f32.gmra.mxu0 %v229
        %v971 = vpop.f32.mrf.mxu0
        %v972 = vadd.f32 %v464, %v971
        %973 = vmatmul.f32.gmra.mxu0 %v230
        %v974 = vpop.f32.mrf.mxu0
        %v975 = vadd.f32 %v469, %v974
        %976 = vmatmul.f32.gmra.mxu0 %v231
        %v977 = vpop.f32.mrf.mxu0
        %v978 = vadd.f32 %v474, %v977
        %979 = vmatmul.f32.gmra.mxu0 %v232
        %v980 = vpop.f32.mrf.mxu0
        %v981 = vadd.f32 %v479, %v980
        %982 = vmatmul.f32.gmra.mxu0 %v233
        %v983 = vpop.f32.mrf.mxu0
        %v984 = vadd.f32 %v484, %v983
        %985 = vmatmul.f32.gmra.mxu0 %v234
        %v986 = vpop.f32.mrf.mxu0
        %v987 = vadd.f32 %v489, %v986
        %988 = vmatmul.f32.gmra.mxu0 %v235
        %v989 = vpop.f32.mrf.mxu0
        %v990 = vadd.f32 %v494, %v989
        %991 = vmatmul.f32.gmra.mxu0 %v236
        %v992 = vpop.f32.mrf.mxu0
        %v993 = vadd.f32 %v499, %v992
        %994 = vmatmul.f32.gmra.mxu0 %v237
        %v995 = vpop.f32.mrf.mxu0
        %v996 = vadd.f32 %v504, %v995
        %997 = vmatmul.f32.gmra.mxu0 %v238
        %v998 = vpop.f32.mrf.mxu0
        %v999 = vadd.f32 %v509, %v998
        %1000 = vmatmul.f32.gmra.mxu0 %v239
        %v1001 = vpop.f32.mrf.mxu0
        %v1002 = vadd.f32 %v514, %v1001
        %1003 = vmatmul.f32.gmra.mxu0 %v240
        %v1004 = vpop.f32.mrf.mxu0
        %v1005 = vadd.f32 %v519, %v1004
        %1006 = vmatmul.f32.gmra.mxu0 %v241
        %v1007 = vpop.f32.mrf.mxu0
        %v1008 = vadd.f32 %v524, %v1007
        %1009 = vmatmul.f32.gmra.mxu0 %v242
        %v1010 = vpop.f32.mrf.mxu0
        %v1011 = vadd.f32 %v529, %v1010
        %1012 = vmatmul.f32.gmra.mxu0 %v243
        %v1013 = vpop.f32.mrf.mxu0
        %v1014 = vadd.f32 %v534, %v1013
        %1015 = vmatmul.f32.gmra.mxu0 %v244
        %v1016 = vpop.f32.mrf.mxu0
        %v1017 = vadd.f32 %v539, %v1016
        %1018 = vmatmul.f32.gmra.mxu0 %v245
        %v1019 = vpop.f32.mrf.mxu0
        %v1020 = vadd.f32 %v544, %v1019
        %1021 = vmatmul.f32.gmra.mxu0 %v246
        %v1022 = vpop.f32.mrf.mxu0
        %v1023 = vadd.f32 %v549, %v1022
        %1024 = vmatmul.f32.gmra.mxu0 %v247
        %v1025 = vpop.f32.mrf.mxu0
        %v1026 = vadd.f32 %v554, %v1025
        %1027 = vmatmul.f32.gmra.mxu0 %v248
        %v1028 = vpop.f32.mrf.mxu0
        %v1029 = vadd.f32 %v559, %v1028
        %1030 = vmatmul.f32.gmra.mxu0 %v249
        %v1031 = vpop.f32.mrf.mxu0
        %v1032 = vadd.f32 %v564, %v1031
        %1033 = vmatmul.f32.gmra.mxu0 %v250
        %v1034 = vpop.f32.mrf.mxu0
        %v1035 = vadd.f32 %v569, %v1034
        %1036 = vmatmul.f32.gmra.mxu0 %v251
        %v1037 = vpop.f32.mrf.mxu0
        %v1038 = vadd.f32 %v574, %v1037
        %1039 = vmatmul.f32.gmra.mxu0 %v252
        %v1040 = vpop.f32.mrf.mxu0
        %v1041 = vadd.f32 %v579, %v1040
        %1042 = vmatmul.f32.gmra.mxu0 %v253
        %v1043 = vpop.f32.mrf.mxu0
        %v1044 = vadd.f32 %v584, %v1043
        %1045 = vmatmul.f32.gmra.mxu0 %v254
        %v1046 = vpop.f32.mrf.mxu0
        %v1047 = vadd.f32 %v589, %v1046
        %1048 = vmatmul.f32.gmra.mxu0 %v255
        %v1049 = vpop.f32.mrf.mxu0
        %v1050 = vadd.f32 %v594, %v1049
        %1051 = vmatmul.f32.gmra.mxu0 %v256
        %v1052 = vpop.f32.mrf.mxu0
        %v1053 = vadd.f32 %v599, %v1052
        %1054 = vmatmul.f32.gmra.mxu0 %v257
        %v1055 = vpop.f32.mrf.mxu0
        %v1056 = vadd.f32 %v604, %v1055
        %1057 = vmatmul.f32.gmra.mxu0 %v258
        %v1058 = vpop.f32.mrf.mxu0
        %v1059 = vadd.f32 %v609, %v1058
        %1060 = vmatmul.f32.gmra.mxu0 %v259
        %v1061 = vpop.f32.mrf.mxu0
        %v1062 = vadd.f32 %v614, %v1061
        %1063 = vmatmul.f32.gmra.mxu0 %v260
        %v1064 = vpop.f32.mrf.mxu0
        %v1065 = vadd.f32 %v619, %v1064
        %1066 = vmatmul.f32.gmra.mxu0 %v261
        %v1067 = vpop.f32.mrf.mxu0
        %v1068 = vadd.f32 %v624, %v1067
        %1069 = vmatmul.f32.gmra.mxu0 %v262
        %v1070 = vpop.f32.mrf.mxu0
        %v1071 = vadd.f32 %v629, %v1070
        %1072 = vmatmul.f32.gmra.mxu0 %v263
        %v1073 = vpop.f32.mrf.mxu0
        %v1074 = vadd.f32 %v634, %v1073
        %1075 = vmatmul.f32.gmra.mxu0 %v264
        %v1076 = vpop.f32.mrf.mxu0
        %v1077 = vadd.f32 %v639, %v1076
        %1078 = vmatmul.f32.gmra.mxu0 %v265
        %v1079 = vpop.f32.mrf.mxu0
        %v1080 = vadd.f32 %v644, %v1079
        %1081 = vmatmul.f32.gmra.mxu0 %v266
        %v1082 = vpop.f32.mrf.mxu0
        %v1083 = vadd.f32 %v649, %v1082
        %1084 = vmatmul.f32.gmra.mxu0 %v267
        %v1085 = vpop.f32.mrf.mxu0
        %v1086 = vadd.f32 %v654, %v1085
        %1087 = vmatmul.f32.gmra.mxu0 %v268
        %v1088 = vpop.f32.mrf.mxu0
        %v1089 = vadd.f32 %v659, %v1088
        %1090 = vmatmul.f32.gmra.mxu0 %v269
        %v1091 = vpop.f32.mrf.mxu0
        %v1092 = vadd.f32 %v664, %v1091
        %1093 = vmatmul.f32.gmra.mxu0 %v270
        %v1094 = vpop.f32.mrf.mxu0
        %v1095 = vadd.f32 %v669, %v1094
        %1096 = vmatmul.f32.gmra.mxu0 %v271
        %v1097 = vpop.f32.mrf.mxu0
        %v1098 = vadd.f32 %v674, %v1097
        %1099 = vmatmul.f32.gmra.mxu0 %v272
        %v1100 = vpop.f32.mrf.mxu0
        %v1101 = vadd.f32 %v679, %v1100
        %1102 = vmatmul.f32.gmra.mxu0 %v273
        %v1103 = vpop.f32.mrf.mxu0
        %v1104 = vadd.f32 %v684, %v1103
        %1105 = vmatmul.f32.gmra.mxu0 %v274
        %v1106 = vpop.f32.mrf.mxu0
        %v1107 = vadd.f32 %v689, %v1106
        %1108 = vdwg.mxu0
        %v1109 = vtanh.pop %v709
        %v1110 = vtanh.pop %v918
        %v1111 = vtanh.pop %v712
        %v1112 = vtanh.pop %v921
        %v1113 = vtanh.pop %v715
        %v1114 = vtanh.pop %v924
        %v1115 = vtanh.pop %v718
        %v1116 = vtanh.pop %v927
        %v1117 = vtanh.pop %v721
        %v1118 = vtanh.pop %v930
        %v1119 = vtanh.pop %v724
        %v1120 = vtanh.pop %v933
        %v1121 = vtanh.pop %v727
        %v1122 = vtanh.pop %v936
        %v1123 = vtanh.pop %v730
        %v1124 = vtanh.pop %v939
        %v1125 = vtanh.pop %v733
        %v1126 = vtanh.pop %v942
        %v1127 = vtanh.pop %v736
        %v1128 = vtanh.pop %v945
        %v1129 = vtanh.pop %v739
        %v1130 = vtanh.pop %v948
        %v1131 = vtanh.pop %v742
        %v1132 = vtanh.pop %v951
        %v1133 = vtanh.pop %v745
        %v1134 = vtanh.pop %v954
        %v1135 = vtanh.pop %v748
        %v1136 = vtanh.pop %v957
        %v1137 = vtanh.pop %v751
        %v1138 = vtanh.pop %v960
        %v1139 = vtanh.pop %v754
        %v1140 = vtanh.pop %v963
        %v1141 = vtanh.pop %v757
        %v1142 = vtanh.pop %v966
        %v1143 = vtanh.pop %v760
        %v1144 = vtanh.pop %v969
        %v1145 = vtanh.pop %v763
        %v1146 = vtanh.pop %v972
        %v1147 = vtanh.pop %v766
        %v1148 = vtanh.pop %v975
        %v1149 = vtanh.pop %v769
        %v1150 = vtanh.pop %v978
        %v1151 = vtanh.pop %v772
        %v1152 = vtanh.pop %v981
        %v1153 = vtanh.pop %v775
        %v1154 = vtanh.pop %v984
        %v1155 = vtanh.pop %v778
        %v1156 = vtanh.pop %v987
        %v1157 = vtanh.pop %v781
        %v1158 = vtanh.pop %v990
        %v1159 = vtanh.pop %v784
        %v1160 = vtanh.pop %v993
        %v1161 = vtanh.pop %v787
        %v1162 = vtanh.pop %v996
        %v1163 = vtanh.pop %v790
        %v1164 = vtanh.pop %v999
        %v1165 = vtanh.pop %v793
        %v1166 = vtanh.pop %v1002
        %v1167 = vtanh.pop %v796
        %v1168 = vtanh.pop %v1005
        %v1169 = vtanh.pop %v799
        %v1170 = vtanh.pop %v1008
        %v1171 = vtanh.pop %v802
        %v1172 = vtanh.pop %v1011
        %v1173 = vtanh.pop %v805
        %v1174 = vtanh.pop %v1014
        %v1175 = vtanh.pop %v808
        %v1176 = vtanh.pop %v1017
        %v1177 = vtanh.pop %v811
        %v1178 = vtanh.pop %v1020
        %v1179 = vtanh.pop %v814
        %v1180 = vtanh.pop %v1023
        %v1181 = vtanh.pop %v817
        %v1182 = vtanh.pop %v1026
        %v1183 = vtanh.pop %v820
        %v1184 = vtanh.pop %v1029
        %v1185 = vtanh.pop %v823
        %v1186 = vtanh.pop %v1032
        %v1187 = vtanh.pop %v826
        %v1188 = vtanh.pop %v1035
        %v1189 = vtanh.pop %v829
        %v1190 = vtanh.pop %v1038
        %v1191 = vtanh.pop %v832
        %v1192 = vtanh.pop %v1041
        %v1193 = vtanh.pop %v835
        %v1194 = vtanh.pop %v1044
        %v1195 = vtanh.pop %v838
        %v1196 = vtanh.pop %v1047
        %v1197 = vtanh.pop %v841
        %v1198 = vtanh.pop %v1050
        %v1199 = vtanh.pop %v844
        %v1200 = vtanh.pop %v1053
        %v1201 = vtanh.pop %v847
        %v1202 = vtanh.pop %v1056
        %v1203 = vtanh.pop %v850
        %v1204 = vtanh.pop %v1059
        %v1205 = vtanh.pop %v853
        %v1206 = vtanh.pop %v1062
        %v1207 = vtanh.pop %v856
        %v1208 = vtanh.pop %v1065
        %v1209 = vtanh.pop %v859
        %v1210 = vtanh.pop %v1068
        %v1211 = vtanh.pop %v862
        %v1212 = vtanh.pop %v1071
        %v1213 = vtanh.pop %v865
        %v1214 = vtanh.pop %v1074
        %v1215 = vtanh.pop %v868
        %v1216 = vtanh.pop %v1077
        %v1217 = vtanh.pop %v871
        %v1218 = vtanh.pop %v1080
        %v1219 = vtanh.pop %v874
        %v1220 = vtanh.pop %v1083
        %v1221 = vtanh.pop %v877
        %v1222 = vtanh.pop %v1086
        %v1223 = vtanh.pop %v880
        %v1224 = vtanh.pop %v1089
        %v1225 = vtanh.pop %v883
        %v1226 = vtanh.pop %v1092
        %v1227 = vtanh.pop %v886
        %v1228 = vtanh.pop %v1095
        %v1229 = vtanh.pop %v889
        %v1230 = vtanh.pop %v1098
        %v1231 = vtanh.pop %v892
        %v1232 = vtanh.pop %v1101
        %v1233 = vtanh.pop %v895
        %v1234 = vtanh.pop %v1104
        %v1235 = vtanh.pop %v898
        %v1236 = vtanh.pop %v1107
        %1237 = vst [vmem:[%s208] sm:$0xff] %v1109
        %1238 = vst [vmem:[%s208 + $0x8] sm:$0xff] %v1110
        %1239 = vst [vmem:[%s208 + $0x10] sm:$0xff] %v1111
        %1240 = vst [vmem:[%s208 + $0x18] sm:$0xff] %v1112
        %1241 = vst [vmem:[%s208 + $0x20] sm:$0xff] %v1113
        %1242 = vst [vmem:[%s208 + $0x28] sm:$0xff] %v1114
        %1243 = vst [vmem:[%s208 + $0x30] sm:$0xff] %v1115
        %1244 = vst [vmem:[%s208 + $0x38] sm:$0xff] %v1116
        %1245 = vst [vmem:[%s208 + $0x40] sm:$0xff] %v1117
        %1246 = vst [vmem:[%s208 + $0x48] sm:$0xff] %v1118
        %1247 = vst [vmem:[%s208 + $0x50] sm:$0xff] %v1119
        %1248 = vst [vmem:[%s208 + $0x58] sm:$0xff] %v1120
        %1249 = vst [vmem:[%s208 + $0x60] sm:$0xff] %v1121
        %1250 = vst [vmem:[%s208 + $0x68] sm:$0xff] %v1122
        %1251 = vst [vmem:[%s208 + $0x70] sm:$0xff] %v1123
        %1252 = vst [vmem:[%s208 + $0x78] sm:$0xff] %v1124
        %1253 = vst [vmem:[%s208 + $0x80] sm:$0xff] %v1125
        %1254 = vst [vmem:[%s208 + $0x88] sm:$0xff] %v1126
        %1255 = vst [vmem:[%s208 + $0x90] sm:$0xff] %v1127
        %1256 = vst [vmem:[%s208 + $0x98] sm:$0xff] %v1128
        %1257 = vst [vmem:[%s208 + $0xa0] sm:$0xff] %v1129
        %1258 = vst [vmem:[%s208 + $0xa8] sm:$0xff] %v1130
        %1259 = vst [vmem:[%s208 + $0xb0] sm:$0xff] %v1131
        %1260 = vst [vmem:[%s208 + $0xb8] sm:$0xff] %v1132
        %1261 = vst [vmem:[%s208 + $0xc0] sm:$0xff] %v1133
        %1262 = vst [vmem:[%s208 + $0xc8] sm:$0xff] %v1134
        %1263 = vst [vmem:[%s208 + $0xd0] sm:$0xff] %v1135
        %1264 = vst [vmem:[%s208 + $0xd8] sm:$0xff] %v1136
        %1265 = vst [vmem:[%s208 + $0xe0] sm:$0xff] %v1137
        %1266 = vst [vmem:[%s208 + $0xe8] sm:$0xff] %v1138
        %1267 = vst [vmem:[%s208 + $0xf0] sm:$0xff] %v1139
        %1268 = vst [vmem:[%s208 + $0xf8] sm:$0xff] %v1140
        %1269 = vst [vmem:[%s208 + $0x100] sm:$0xff] %v1141
        %1270 = vst [vmem:[%s208 + $0x108] sm:$0xff] %v1142
        %1271 = vst [vmem:[%s208 + $0x110] sm:$0xff] %v1143
        %1272 = vst [vmem:[%s208 + $0x118] sm:$0xff] %v1144
        %1273 = vst [vmem:[%s208 + $0x120] sm:$0xff] %v1145
        %1274 = vst [vmem:[%s208 + $0x128] sm:$0xff] %v1146
        %1275 = vst [vmem:[%s208 + $0x130] sm:$0xff] %v1147
        %1276 = vst [vmem:[%s208 + $0x138] sm:$0xff] %v1148
        %1277 = vst [vmem:[%s208 + $0x140] sm:$0xff] %v1149
        %1278 = vst [vmem:[%s208 + $0x148] sm:$0xff] %v1150
        %1279 = vst [vmem:[%s208 + $0x150] sm:$0xff] %v1151
        %1280 = vst [vmem:[%s208 + $0x158] sm:$0xff] %v1152
        %1281 = vst [vmem:[%s208 + $0x160] sm:$0xff] %v1153
        %1282 = vst [vmem:[%s208 + $0x168] sm:$0xff] %v1154
        %1283 = vst [vmem:[%s208 + $0x170] sm:$0xff] %v1155
        %1284 = vst [vmem:[%s208 + $0x178] sm:$0xff] %v1156
        %1285 = vst [vmem:[%s208 + $0x180] sm:$0xff] %v1157
        %1286 = vst [vmem:[%s208 + $0x188] sm:$0xff] %v1158
        %1287 = vst [vmem:[%s208 + $0x190] sm:$0xff] %v1159
        %1288 = vst [vmem:[%s208 + $0x198] sm:$0xff] %v1160
        %1289 = vst [vmem:[%s208 + $0x1a0] sm:$0xff] %v1161
        %1290 = vst [vmem:[%s208 + $0x1a8] sm:$0xff] %v1162
        %1291 = vst [vmem:[%s208 + $0x1b0] sm:$0xff] %v1163
        %1292 = vst [vmem:[%s208 + $0x1b8] sm:$0xff] %v1164
        %1293 = vst [vmem:[%s208 + $0x1c0] sm:$0xff] %v1165
        %1294 = vst [vmem:[%s208 + $0x1c8] sm:$0xff] %v1166
        %1295 = vst [vmem:[%s208 + $0x1d0] sm:$0xff] %v1167
        %1296 = vst [vmem:[%s208 + $0x1d8] sm:$0xff] %v1168
        %1297 = vst [vmem:[%s208 + $0x1e0] sm:$0xff] %v1169
        %1298 = vst [vmem:[%s208 + $0x1e8] sm:$0xff] %v1170
        %1299 = vst [vmem:[%s208 + $0x1f0] sm:$0xff] %v1171
        %1300 = vst [vmem:[%s208 + $0x1f8] sm:$0xff] %v1172
        %1301 = vst [vmem:[%s208 + $0x200] sm:$0xff] %v1173
        %1302 = vst [vmem:[%s208 + $0x208] sm:$0xff] %v1174
        %1303 = vst [vmem:[%s208 + $0x210] sm:$0xff] %v1175
        %1304 = vst [vmem:[%s208 + $0x218] sm:$0xff] %v1176
        %1305 = vst [vmem:[%s208 + $0x220] sm:$0xff] %v1177
        %1306 = vst [vmem:[%s208 + $0x228] sm:$0xff] %v1178
        %1307 = vst [vmem:[%s208 + $0x230] sm:$0xff] %v1179
        %1308 = vst [vmem:[%s208 + $0x238] sm:$0xff] %v1180
        %1309 = vst [vmem:[%s208 + $0x240] sm:$0xff] %v1181
        %1310 = vst [vmem:[%s208 + $0x248] sm:$0xff] %v1182
        %1311 = vst [vmem:[%s208 + $0x250] sm:$0xff] %v1183
        %1312 = vst [vmem:[%s208 + $0x258] sm:$0xff] %v1184
        %1313 = vst [vmem:[%s208 + $0x260] sm:$0xff] %v1185
        %1314 = vst [vmem:[%s208 + $0x268] sm:$0xff] %v1186
        %1315 = vst [vmem:[%s208 + $0x270] sm:$0xff] %v1187
        %1316 = vst [vmem:[%s208 + $0x278] sm:$0xff] %v1188
        %1317 = vst [vmem:[%s208 + $0x280] sm:$0xff] %v1189
        %1318 = vst [vmem:[%s208 + $0x288] sm:$0xff] %v1190
        %1319 = vst [vmem:[%s208 + $0x290] sm:$0xff] %v1191
        %1320 = vst [vmem:[%s208 + $0x298] sm:$0xff] %v1192
        %1321 = vst [vmem:[%s208 + $0x2a0] sm:$0xff] %v1193
        %1322 = vst [vmem:[%s208 + $0x2a8] sm:$0xff] %v1194
        %1323 = vst [vmem:[%s208 + $0x2b0] sm:$0xff] %v1195
        %1324 = vst [vmem:[%s208 + $0x2b8] sm:$0xff] %v1196
        %1325 = vst [vmem:[%s208 + $0x2c0] sm:$0xff] %v1197
        %1326 = vst [vmem:[%s208 + $0x2c8] sm:$0xff] %v1198
        %1327 = vst [vmem:[%s208 + $0x2d0] sm:$0xff] %v1199
        %1328 = vst [vmem:[%s208 + $0x2d8] sm:$0xff] %v1200
        %1329 = vst [vmem:[%s208 + $0x2e0] sm:$0xff] %v1201
        %1330 = vst [vmem:[%s208 + $0x2e8] sm:$0xff] %v1202
        %1331 = vst [vmem:[%s208 + $0x2f0] sm:$0xff] %v1203
        %1332 = vst [vmem:[%s208 + $0x2f8] sm:$0xff] %v1204
        %1333 = vst [vmem:[%s208 + $0x300] sm:$0xff] %v1205
        %1334 = vst [vmem:[%s208 + $0x308] sm:$0xff] %v1206
        %1335 = vst [vmem:[%s208 + $0x310] sm:$0xff] %v1207
        %1336 = vst [vmem:[%s208 + $0x318] sm:$0xff] %v1208
        %1337 = vst [vmem:[%s208 + $0x320] sm:$0xff] %v1209
        %1338 = vst [vmem:[%s208 + $0x328] sm:$0xff] %v1210
        %1339 = vst [vmem:[%s208 + $0x330] sm:$0xff] %v1211
        %1340 = vst [vmem:[%s208 + $0x338] sm:$0xff] %v1212
        %1341 = vst [vmem:[%s208 + $0x340] sm:$0xff] %v1213
        %1342 = vst [vmem:[%s208 + $0x348] sm:$0xff] %v1214
        %1343 = vst [vmem:[%s208 + $0x350] sm:$0xff] %v1215
        %1344 = vst [vmem:[%s208 + $0x358] sm:$0xff] %v1216
        %1345 = vst [vmem:[%s208 + $0x360] sm:$0xff] %v1217
        %1346 = vst [vmem:[%s208 + $0x368] sm:$0xff] %v1218
        %1347 = vst [vmem:[%s208 + $0x370] sm:$0xff] %v1219
        %1348 = vst [vmem:[%s208 + $0x378] sm:$0xff] %v1220
        %1349 = vst [vmem:[%s208 + $0x380] sm:$0xff] %v1221
        %1350 = vst [vmem:[%s208 + $0x388] sm:$0xff] %v1222
        %1351 = vst [vmem:[%s208 + $0x390] sm:$0xff] %v1223
        %1352 = vst [vmem:[%s208 + $0x398] sm:$0xff] %v1224
        %1353 = vst [vmem:[%s208 + $0x3a0] sm:$0xff] %v1225
        %1354 = vst [vmem:[%s208 + $0x3a8] sm:$0xff] %v1226
        %1355 = vst [vmem:[%s208 + $0x3b0] sm:$0xff] %v1227
        %1356 = vst [vmem:[%s208 + $0x3b8] sm:$0xff] %v1228
        %1357 = vst [vmem:[%s208 + $0x3c0] sm:$0xff] %v1229
        %1358 = vst [vmem:[%s208 + $0x3c8] sm:$0xff] %v1230
        %1359 = vst [vmem:[%s208 + $0x3d0] sm:$0xff] %v1231
        %1360 = vst [vmem:[%s208 + $0x3d8] sm:$0xff] %v1232
        %1361 = vst [vmem:[%s208 + $0x3e0] sm:$0xff] %v1233
        %1362 = vst [vmem:[%s208 + $0x3e8] sm:$0xff] %v1234
        %1363 = vst [vmem:[%s208 + $0x3f0] sm:$0xff] %v1235
        %1364 = vst [vmem:[%s208 + $0x3f8] sm:$0xff] %v1236
        %s1365 = sand.u32 %s112, 1
        %s1366 = scalar_lea.sflag [#allocation4], %s1365
        %s1367 = sand.u32 %s112, 1
        %s1368 = smul.addr %s1367, 1024
        %s1369 = scalar_lea.vmem [#allocation5], %s1368
        // Predicated region
        $region37: #{tpu_custom_call.1} parent=31 // pred_check
          %p1370 = pneg %p122
        $region38: #{tpu_custom_call.1} parent=31 // pred_check_branch
          %1372 = sbr.rel (%p1370) target = $region40
        $region39: #{tpu_custom_call.1} parent=31 // pred_region
          %s1373 = smul.u32 2, %s25
          %1375 = vsyncadd %s1366, 0
          %s1376 = smul.addr %s24, 128
          %s1377 = sadd.s32 %s1373, %s1376
          %s1378 = smul.addr %s1377, 8
          %s1379 = scalar_lea.hbm %s3, %s1378
          %s1380 = sshll.u32 %s1369, 4
          %s1381 = int_to_ptr.vmem [resolvable:$true] %s1380
          %s1382 = sshll.u32 %s1379, 4
          %s1383 = int_to_ptr.hbm [resolvable:$true] %s1382
          %1388 = dma.vmem_to_hbm [thread:$0]  %s1381, 16384, %s1383, %s1366, 256, 256, 16
        $region40: #{tpu_custom_call.1} parent=31 // pred_fallthru
          _
      $region32: #{tpu_custom_call.1} parent=5 // pred_fallthru
        _
      %p1389 = scmp.le.s32.totalorder 2, %s15
      // Predicated region
      $region41: #{tpu_custom_call.1} parent=5 // pred_check
        %p1390 = pneg %p1389
      $region42: #{tpu_custom_call.1} parent=5 // pred_check_branch
        %1392 = sbr.rel (%p1390) target = $region44
      $region43: #{tpu_custom_call.1} parent=5 // pred_region
        %s1393 = ssub.s32 %s15, 2
        // Predicated region
        $region45: #{tpu_custom_call.1} parent=43 // pred_check
          %p1394 = pneg %p128
        $region46: #{tpu_custom_call.1} parent=43 // pred_check_branch
          %1396 = sbr.rel (%p1394) target = $region48
        $region47: #{tpu_custom_call.1} parent=43 // pred_region
          %s1397 = sand.u32 %s113, 1
          %s1398 = scalar_lea.sflag [#allocation4], %s1397
          %s1399 = sand.u32 %s113, 1
          %s1400 = smul.addr %s1399, 1024
          %s1401 = scalar_lea.vmem [#allocation5], %s1400
          %1403 = dma.done %s1398, 16384
        $region48: #{tpu_custom_call.1} parent=43 // pred_fallthru
          _
      $region44: #{tpu_custom_call.1} parent=5 // pred_fallthru
        _
    $region6: #{tpu_custom_call.1} parent=1 // loop_footer
      %s19 = sadd.s32 1, %s15
    $region7: #{tpu_custom_call.1} parent=1 // loop_footer_branch
      %14 = sbr.rel target = $region3
    $region8: #{tpu_custom_call.1} parent=1 // loop_exit
      _
    %1404 = vsyncpa [#allocation3], 1
    %s1405 = scalar_lea.sflag [#allocation3], 1
    %1406 = vsyncpa %s1405, 1
    %1407 = vsyncpa [#allocation4], 1
    %s1408 = scalar_lea.sflag [#allocation4], 1
    %1409 = vsyncpa %s1408, 1

</llo_original>
